<compile_context>
chip_gen: v7x
topology: tpu7x:2x2x1
jax: 0.10.0
libtpu: 0.0.40
codegen_flags: <defaults>
</compile_context>

<pallas_src>
import functools

import jax
import jax.numpy as jnp
from jax.experimental import pallas as pl
from jax.experimental.pallas import tpu as pltpu

_LANES = 128
_SUBLANES = 8
_VREG_ELEMS = _LANES * _SUBLANES            # 1024 f32 elements = one vreg
_TARGET_TILE_BYTES = 4 << 20                # ~4 MiB tiles: >=85% of HBM roofline
_CORE_SPLITS = 2                            # shard pass 1 across both TCs on v7x


def _vmem_capacity_bytes():
    """Best-effort per-core VMEM capacity query with a conservative fallback."""
    try:
        info = pltpu.get_tpu_info()
        cap = getattr(info, "vmem_capacity_bytes", None)
        if cap:
            return int(cap)
    except Exception:
        pass
    return 64 * 1024 * 1024   # v7x per-TensorCore VMEM (smallest current gen)


def _round_up(x, m):
    return ((x + m - 1) // m) * m


# ---------------------------------------------------------------------------
# Path A: whole slab resident in VMEM (1 HBM read + 1 HBM write).
# ---------------------------------------------------------------------------
def _resident_kernel(x_ref, o_ref, *, inv_n):
    x = x_ref[...]
    rows = x.shape[0]
    # Strided (8,128) accumulation: cheap VPU adds, no whole-slab f32
    # temporary for sub-32-bit dtypes; one small cross-lane reduce at the end.
    x3 = x.reshape(rows // _SUBLANES, _SUBLANES, _LANES)
    acc = jnp.sum(x3.astype(jnp.float32), axis=0)            # (8, 128) f32
    mean = jnp.sum(acc) * inv_n                               # true-count mean
    # Subtract in f32, cast once (keeps zero-mean tight for bf16 inputs).
    o_ref[...] = (x.astype(jnp.float32) - mean).astype(o_ref.dtype)


# ---------------------------------------------------------------------------
# Path B, pass 1: tiled partial-sum reduction.
# Leading "parallel" axis of size _CORE_SPLITS gives each TensorCore its own
# resident (1,8,128) f32 accumulator block; the inner "arbitrary" axis walks
# that core's tiles.  Dummy tiles (odd tile counts) are skipped via pl.when.
# ---------------------------------------------------------------------------
def _tile_sum_kernel(x_ref, partial_ref, *, num_tiles, tiles_per_core):
    i = pl.program_id(1)

    @pl.when(i == 0)
    def _init():
        partial_ref[...] = jnp.zeros_like(partial_ref)

    tile_idx = pl.program_id(0) * tiles_per_core + i

    @pl.when(tile_idx < num_tiles)
    def _accum():
        x = x_ref[...].astype(jnp.float32)                          # (tile_rows, 128)
        x3 = x.reshape(x.shape[0] // _SUBLANES, _SUBLANES, _LANES)  # native regroup
        partial_ref[...] += jnp.sum(x3, axis=0)[None]               # VPU adds


# ---------------------------------------------------------------------------
# Path B, pass 2: tiled subtract; mean broadcast from an SMEM scalar.
# ---------------------------------------------------------------------------
def _subtract_kernel(mean_ref, x_ref, o_ref):
    mean = mean_ref[0, 0]
    o_ref[...] = (x_ref[...].astype(jnp.float32) - mean).astype(o_ref.dtype)


def centered_layer(x, *, force_tiled=False):
    """X - X.mean() over all elements (torch CenteredLayer semantics).

    Floating dtypes assumed (PyTorch's .mean() raises on integer tensors).
    """
    orig_shape = x.shape
    dtype = x.dtype
    total = 1
    for d in orig_shape:
        total *= int(d)

    itemsize = jnp.dtype(dtype).itemsize
    capacity = _vmem_capacity_bytes()
    is_f32 = jnp.dtype(dtype) == jnp.dtype(jnp.float32)

    # ---- Resident-path sizing (loosened cutoff) ---------------------------
    res_padded_total = _round_up(total, _VREG_ELEMS)
    res_bytes = res_padded_total * itemsize
    # Gridless call: one input + one output VMEM buffer (no double-buffering),
    # plus a full f32 temp for the subtract when the dtype is narrower than f32.
    f32_temp = 0 if is_f32 else res_padded_total * 4
    resident_need = 2 * res_bytes + f32_temp + (2 << 20)
    resident_budget = capacity - (16 << 20)
    use_resident = (not force_tiled) and (resident_need <= resident_budget)

    if use_resident:
        padded_total = res_padded_total
        x_flat = x.reshape(total)
        if padded_total != total:
            x_flat = jnp.pad(x_flat, (0, padded_total - total))
        rows = padded_total // _LANES
        x2d = x_flat.reshape(rows, _LANES)

        vmem_limit = int(min(capacity - (8 << 20), max(resident_need, 16 << 20)))
        out2d = pl.pallas_call(
            functools.partial(_resident_kernel, inv_n=1.0 / float(total)),
            out_shape=jax.ShapeDtypeStruct((rows, _LANES), dtype),
            in_specs=[pl.BlockSpec((rows, _LANES), lambda: (0, 0))],
            out_specs=pl.BlockSpec((rows, _LANES), lambda: (0, 0)),
            compiler_params=pltpu.CompilerParams(vmem_limit_bytes=vmem_limit),
        )(x2d)
    else:
        # ~4 MiB tiles (multiple of 8 rows); never larger than the slab itself.
        tile_rows = max(
            _SUBLANES,
            (_TARGET_TILE_BYTES // (_LANES * itemsize)) // _SUBLANES * _SUBLANES)
        rows_min = _round_up(total, _VREG_ELEMS) // _LANES
        tile_rows = min(tile_rows, rows_min)

        # Single pad, directly to the tile multiple (covers (8,128) alignment
        # too).  Zero padding keeps the sum unbiased; no pad for aligned sizes.
        # TODO(synk): for unaligned shapes this is still one full-array copy;
        # removable with in-kernel ragged-tile masking on the last tile.
        padded_total = _round_up(total, tile_rows * _LANES)
        x_flat = x.reshape(total)
        if padded_total != total:
            x_flat = jnp.pad(x_flat, (0, padded_total - total))
        rows = padded_total // _LANES
        x2d = x_flat.reshape(rows, _LANES)

        num_tiles = rows // tile_rows
        tiles_per_core = pl.cdiv(num_tiles, _CORE_SPLITS)

        # Pass 2 keeps 2x in + 2x out tiles live (double buffering) plus an f32
        # temp for narrow dtypes: ~48 MiB effective on v7x, 64 MiB on v6e/v5e.
        tiled_vmem_limit = int(min(capacity - (16 << 20), 64 << 20))

        # Pass 1: per-tile partial sums -> per-core (8,128) f32 accumulators.
        partial = pl.pallas_call(
            functools.partial(_tile_sum_kernel, num_tiles=num_tiles,
                              tiles_per_core=tiles_per_core),
            out_shape=jax.ShapeDtypeStruct((_CORE_SPLITS, _SUBLANES, _LANES),
                                           jnp.float32),
            grid=(_CORE_SPLITS, tiles_per_core),
            in_specs=[pl.BlockSpec(
                (tile_rows, _LANES),
                lambda c, i: (jnp.minimum(c * tiles_per_core + i,
                                          num_tiles - 1), 0))],
            out_specs=pl.BlockSpec((1, _SUBLANES, _LANES),
                                   lambda c, i: (c, 0, 0)),
            compiler_params=pltpu.CompilerParams(
                dimension_semantics=("parallel", "arbitrary"),
                vmem_limit_bytes=tiled_vmem_limit),
        )(x2d)

        # Final 2048-element reduce + mean with the TRUE element count.
        mean = (jnp.sum(partial) / jnp.float32(total)).reshape(1, 1)

        # Pass 2: x - mean over full lane-dense tiles, sharded across cores.
        out2d = pl.pallas_call(
            _subtract_kernel,
            out_shape=jax.ShapeDtypeStruct((rows, _LANES), dtype),
            grid=(num_tiles,),
            in_specs=[
                pl.BlockSpec(memory_space=pltpu.MemorySpace.SMEM),
                pl.BlockSpec((tile_rows, _LANES), lambda i: (i, 0)),
            ],
            out_specs=pl.BlockSpec((tile_rows, _LANES), lambda i: (i, 0)),
            compiler_params=pltpu.CompilerParams(
                dimension_semantics=("parallel",),
                vmem_limit_bytes=tiled_vmem_limit),
        )(mean, x2d)

    out_flat = out2d.reshape(-1)
    if padded_total != total:
        out_flat = out_flat[:total]          # free reshape when no padding
    return out_flat.reshape(orig_shape)


if __name__ == "__main__":
    key = jax.random.PRNGKey(0)
    # NCHW input matching the module's typical use: batch=2, channels=4, 16x16.
    x = jax.random.normal(key, (2, 4, 16, 16), dtype=jnp.float32)

    y = centered_layer(x)                      # small -> VMEM-resident path
    jax.block_until_ready(y)

    y_ref = x - jnp.mean(x)
    assert y.shape == x.shape
    assert jnp.allclose(y, y_ref, atol=1e-5, rtol=1e-5)
    assert abs(float(jnp.mean(y))) < 1e-5

    # Also exercise the tiled two-pass path (used for large inputs) on a
    # non-lane-aligned shape so the single pad, the per-core accumulators,
    # the dummy-tile skip, and the SMEM mean broadcast are all covered.
    x2 = jax.random.normal(jax.random.PRNGKey(1), (2, 4, 131, 130),
                           dtype=jnp.float32)
    y2 = centered_layer(x2, force_tiled=True)
    jax.block_until_ready(y2)
    y2_ref = x2 - jnp.mean(x2)
    assert y2.shape == x2.shape
    assert jnp.allclose(y2, y2_ref, atol=1e-4, rtol=1e-4)

    print("KERNEL_OK")
</pallas_src>

<mosaic_0001>
module attributes {stable_mosaic.version = 11 : i64} {
  func.func @_resident_kernel(%arg0: memref<16x128xf32, #tpu.memory_space<vmem>>, %arg1: memref<16x128xf32, #tpu.memory_space<vmem>>) attributes {dimension_semantics = [], scalar_prefetch = 0 : i64, scratch_operands = 0 : i64, tpu.core_type = #tpu.core_type<tc>} {
    %c0 = arith.constant 0 : index
    %c0_0 = arith.constant 0 : index
    %0 = vector.load %arg0[%c0, %c0_0] : memref<16x128xf32, #tpu.memory_space<vmem>>, vector<16x128xf32>
    %1 = vector.shape_cast %0 : vector<16x128xf32> to vector<2x8x128xf32>
    %cst = arith.constant dense<0.000000e+00> : vector<8x128xf32>
    %2 = vector.multi_reduction <add>, %1, %cst [0] : vector<2x8x128xf32> to vector<8x128xf32>
    %3 = vector.shape_cast %2 : vector<8x128xf32> to vector<1x8x128xf32>
    %cst_1 = arith.constant dense<0.000000e+00> : vector<1xf32>
    %4 = vector.multi_reduction <add>, %3, %cst_1 [1, 2] : vector<1x8x128xf32> to vector<1xf32>
    %5 = vector.shape_cast %4 : vector<1xf32> to vector<1x1x1xf32>
    %6 = vector.extract %5[0, 0, 0] : f32 from vector<1x1x1xf32>
    %cst_2 = arith.constant 4.8828125E-4 : f32
    %7 = arith.mulf %6, %cst_2 : f32
    %8 = vector.broadcast %7 : f32 to vector<16x128xf32>
    %9 = arith.subf %0, %8 : vector<16x128xf32>
    %c0_3 = arith.constant 0 : index
    %c0_4 = arith.constant 0 : index
    %10 = vector.load %arg1[%c0_3, %c0_4] : memref<16x128xf32, #tpu.memory_space<vmem>>, vector<16x128xf32>
    tpu.vector_store %arg1[%c0_3, %c0_4], %9 {strides = array<i32>} : memref<16x128xf32, #tpu.memory_space<vmem>>, vector<16x128xf32>,
    return
  }
}

</mosaic_0001>

<llo_original>
// kernel: tpu_custom_call.1
$region0: #{tpu_custom_call.1}
  #allocation0 [shape = 'u32[]', space=smem, size = 0x4, offset = 0x4, fixed_abs, tag = 'smem constant byte address 0x4 - core index']
  #allocation1 [shape = 'u32[144,128]{1,0:T(1,128)}', space=vmem, size = 0x12000, scoped, tag = 'internal scratch']
  %s0 = inlined_call_operand.hbm [shape: f32[16,128], index: 0, kind: input, shape index: {}]
  %s1 = inlined_call_operand.hbm [shape: f32[16,128], index: 1, kind: output, shape index: {}]
  %s2 = sld [smem:[#allocation0]]
  $region18: #{tpu_custom_call.1} parent=0
    _
  %s4 = ssub.s32 1, %s2
  %s5 = scalar_select 0, %s4, %s2
  $region1: #{tpu_custom_call.1} parent=0
    #allocation2 [shape = 'u8[8192]{0}', space=vmem, size = 0x2000, scoped, tag = 'input window, operand 0, single buffered']
    #allocation3 [shape = 's32[1]{0}', space=sflag, size = 0x4, scoped, tag = 'scoped memory for tpu_custom_call.1']
    #allocation4 [shape = 's32[1]{0}', space=sflag, size = 0x4, scoped, tag = 'scoped memory for tpu_custom_call.1']
    #allocation5 [shape = 'u8[8192]{0}', space=vmem, size = 0x2000, scoped, tag = 'output window, operand 0, single buffered']
    %6 = vsyncpa [#allocation3], 0
    %7 = vsyncpa [#allocation4], 0
    // Predicated region
    $region2: #{tpu_custom_call.1} parent=1 // pred_check
      _
    $region3: #{tpu_custom_call.1} parent=1 // pred_check_branch
      %9 = sbr.rel (0) target = $region5
    $region4: #{tpu_custom_call.1} parent=1 // pred_region
      %s11 = ssub.s32 256, 256
      %12 = vsyncadd [#allocation3], %s11
      %s13 = sshll.u32 [#allocation2], 4
      %s14 = int_to_ptr.vmem [resolvable:$true] %s13
      %19 = dma.hbm_to_vmem [thread:$0]  %s0, 256, %s14, [#allocation3], 128, 128, 8
    $region5: #{tpu_custom_call.1} parent=1 // pred_fallthru
      _
    // Predicated region
    $region6: #{tpu_custom_call.1} parent=1 // pred_check
      _
    $region7: #{tpu_custom_call.1} parent=1 // pred_check_branch
      %21 = sbr.rel (0) target = $region9
    $region8: #{tpu_custom_call.1} parent=1 // pred_region
      %22 = dma.done [#allocation3], 256
    $region9: #{tpu_custom_call.1} parent=1 // pred_fallthru
      _
    %v23 = vld [vmem:[#allocation2] sm:$0xff]
    %v24 = vld [vmem:[#allocation2 + $0x8] sm:$0xff]
    %v25 = vadd.f32 %v23, %v24
    %26 = vadd.xlane.f32.xlu0 %v25
    %v27 = vpop.xlane.xlu0 %26
    %v28 = vrot.slane %v27, 4
    %v29 = vadd.f32 %v27, %v28
    %v30 = vrot.slane %v29, 2
    %v31 = vadd.f32 %v29, %v30
    %v32 = vrot.slane %v31, 1
    %v33 = vadd.f32 %v31, %v32
    %s34 = vtos %v33
    %s35 = smul.f32 %s34, 0.00048828125
    %v36 = vstv %s35
    %v37 = vsub.f32 %v23, %v36
    %v38 = vsub.f32 %v24, %v36
    %39 = vst [vmem:[#allocation5] sm:$0xff] %v37
    %40 = vst [vmem:[#allocation5 + $0x8] sm:$0xff] %v38
    // Predicated region
    $region10: #{tpu_custom_call.1} parent=1 // pred_check
      _
    $region11: #{tpu_custom_call.1} parent=1 // pred_check_branch
      %42 = sbr.rel (0) target = $region13
    $region12: #{tpu_custom_call.1} parent=1 // pred_region
      %s44 = ssub.s32 256, 256
      %45 = vsyncadd [#allocation4], %s44
      %s46 = sshll.u32 [#allocation5], 4
      %s47 = int_to_ptr.vmem [resolvable:$true] %s46
      %52 = dma.vmem_to_hbm [thread:$0]  %s47, 256, %s1, [#allocation4], 128, 128, 8
    $region13: #{tpu_custom_call.1} parent=1 // pred_fallthru
      _
    // Predicated region
    $region14: #{tpu_custom_call.1} parent=1 // pred_check
      _
    $region15: #{tpu_custom_call.1} parent=1 // pred_check_branch
      %54 = sbr.rel (0) target = $region17
    $region16: #{tpu_custom_call.1} parent=1 // pred_region
      %55 = dma.done [#allocation4], 256
    $region17: #{tpu_custom_call.1} parent=1 // pred_fallthru
      _
    %56 = vsyncpa [#allocation3], 1
    %57 = vsyncpa [#allocation4], 1

</llo_original>
